<compile_context>
chip_gen: v7x
topology: tpu7x:2x2x1
jax: 0.10.0
libtpu: 0.0.40
codegen_flags: <defaults>
</compile_context>

<pallas_src>
import functools

import jax
import jax.numpy as jnp
from jax.experimental import pallas as pl
from jax.experimental.pallas import tpu as pltpu

EPS = 1e-5   # nn.BatchNorm1d default eps
K = 5        # kernel_size
PAD = 2      # padding (circular)

# Conservative budgets (bytes): stay well under v5e's 16 MiB default scoped
# VMEM and v7x's 64 MiB physical VMEM.
_FUSED_VMEM_BUDGET = 8 * 1024 * 1024
_STEP_VMEM_BUDGET = 4 * 1024 * 1024


# ----------------------------- in-kernel helpers -----------------------------
def _bn_relu_circ_conv(x, scale, bias, w):
    """Folded-BN + ReLU + circular conv1d (k=5, pad=2) for one block.

    x:     (B, Cin, L) f32
    scale: (Cin, 1) f32   (broadcast over B and L)
    bias:  (Cin, 1) f32
    w:     (Cout, K*Cin) bf16, row order k*Cin + i
    returns (B, Cout, L) f32
    """
    B, cin, L = x.shape
    act = jnp.maximum(x * scale + bias, 0.0)
    # bf16 before the rolls only when the sublane concat stays tile-aligned
    # for packed bf16 (review item: Cin % 16 == 0 guard).
    if cin % 16 == 0:
        act = act.astype(jnp.bfloat16)
    cols = []
    for k in range(K):
        s = (PAD - k) % L                      # rolled[l] = act[(l + k - PAD) % L]
        cols.append(act if s == 0 else pltpu.roll(act, s, 2))
    im2col = jnp.concatenate(cols, axis=1).astype(jnp.bfloat16)   # (B, K*Cin, L)
    wb = jnp.broadcast_to(w, (B,) + w.shape)                      # (B, Cout, K*Cin)
    # Batched MXU contraction, bf16 operands / f32 accumulation.
    return jnp.einsum("bof,bfl->bol", wb, im2col,
                      preferred_element_type=jnp.float32)


def _block_stats(v):
    """Per-channel (mean, centered sum of squares) over (B, L) of a block."""
    cnt = v.shape[0] * v.shape[2]
    m = jnp.sum(jnp.sum(v, axis=0), axis=1, keepdims=True) / cnt   # (C, 1)
    d = v - m
    ss = jnp.sum(jnp.sum(d * d, axis=0), axis=1, keepdims=True)    # (C, 1)
    return m, ss


# ------------------------------ fused kernel ---------------------------------
def _fused_kernel(x_ref, gb1_ref, gb2_ref, w1_ref, w2_ref, o_ref):
    # Whole ResBlock in one kernel invocation: x, weights and gamma/beta live
    # in VMEM; h stays in VMEM/vregs (never written to HBM).
    x = x_ref[...].astype(jnp.float32)                 # (N, C, L)
    cnt = x.shape[0] * x.shape[2]
    gb1 = gb1_ref[...]                                 # (2, C, 1) = [gamma; beta]
    gb2 = gb2_ref[...]                                 # (2, Cout, 1)

    m1, ss1 = _block_stats(x)                          # two-pass (centered) var
    s1 = gb1[0] * jax.lax.rsqrt(ss1 / cnt + EPS)
    b1 = gb1[1] - m1 * s1
    h = _bn_relu_circ_conv(x, s1, b1, w1_ref[...])     # (N, Cout, L) f32

    m2, ss2 = _block_stats(h)
    s2 = gb2[0] * jax.lax.rsqrt(ss2 / cnt + EPS)
    b2 = gb2[1] - m2 * s2
    y = _bn_relu_circ_conv(h, s2, b2, w2_ref[...])

    o_ref[...] = (y + x).astype(o_ref.dtype)


# ------------------------------ tiled kernels --------------------------------
def _stage1_kernel(x_ref, sb_ref, w_ref, h_ref, st_ref):
    # x_ref: (TB, C, L); sb_ref: (2, C, 1) folded bn1 scale/bias;
    # w_ref: (Cout, K*C) bf16; h_ref: (TB, Cout, L) bf16 out;
    # st_ref: (1, 2*Cout, 1) f32 out -- per-block [mean; centered SS] partials.
    x = x_ref[...].astype(jnp.float32)
    sb = sb_ref[...]
    h = _bn_relu_circ_conv(x, sb[0], sb[1], w_ref[...])       # (TB, Cout, L) f32
    h_ref[...] = h.astype(h_ref.dtype)                        # bf16 to HBM
    # BN2 partial stats from the f32 values already in registers (no extra
    # HBM read of h later); centered per block for numerical stability.
    m, ss = _block_stats(h)
    st_ref[0] = jnp.concatenate([m, ss], axis=0)              # (2*Cout, 1)


def _stage2_kernel(h_ref, x_ref, sb_ref, w_ref, o_ref):
    # h_ref: (TB, Cout, L) bf16; x_ref: (TB, C, L) residual input;
    # sb_ref: (2, Cout, 1) folded bn2 scale/bias; w_ref: (Cout, K*Cout) bf16.
    h = h_ref[...].astype(jnp.float32)
    sb = sb_ref[...]
    y = _bn_relu_circ_conv(h, sb[0], sb[1], w_ref[...])
    o_ref[...] = (y + x_ref[...].astype(jnp.float32)).astype(o_ref.dtype)


# ------------------------------ wrapper helpers -------------------------------
def _im2col_weight(w_oik):
    """(Cout, Cin, K) PyTorch layout -> (Cout, K*Cin), row order k*Cin + i, bf16."""
    cout, cin, k = w_oik.shape
    return jnp.transpose(w_oik, (0, 2, 1)).reshape(cout, k * cin).astype(jnp.bfloat16)


def _fused_vmem_estimate(n, c, cout, l, x_itemsize):
    per_nl = (4 * c            # x (f32)
              + 4 * cout       # h (f32)
              + 4 * cout       # y (f32)
              + 2 * K * max(c, cout)   # largest im2col (bf16)
              + x_itemsize * c)        # output block
    return n * l * per_nl + 2 * K * cout * max(c, cout)


def _pick_batch_tile(n, c, cout, l, x_itemsize):
    """Largest TB dividing N that fits the per-step VMEM budget and keeps the
    'parallel' batch axis >= 2 steps (v7x has 2 TensorCores)."""
    def step_bytes(tb):
        per_nl = (2 * x_itemsize * c     # x block, double-buffered
                  + 2 * 2 * cout         # h block (bf16), double-buffered
                  + 4 * cout + 4 * cout  # f32 h / y temporaries
                  + 2 * K * max(c, cout) # im2col (bf16)
                  + x_itemsize * cout)   # out block
        return tb * l * per_nl + 2 * K * cout * max(c, cout)

    tb = 1
    for cand in range(1, n + 1):
        if n % cand == 0 and step_bytes(cand) <= _STEP_VMEM_BUDGET \
                and (n // cand >= 2 or n == 1):
            tb = cand
    return tb


def _resblock_tiled(x, gamma1, beta1, gamma2, beta2, w1m, w2m):
    N, C, L = x.shape
    Cout = w1m.shape[0]
    tb = _pick_batch_tile(N, C, Cout, L, x.dtype.itemsize)
    nb = N // tb

    # bn1 training-mode stats over (N, L): two-pass (centered) variance.
    xf = x.astype(jnp.float32)
    mean1 = jnp.mean(xf, axis=(0, 2))
    var1 = jnp.mean((xf - mean1[None, :, None]) ** 2, axis=(0, 2))
    scale1 = gamma1.astype(jnp.float32) * jax.lax.rsqrt(var1 + EPS)
    bias1 = beta1.astype(jnp.float32) - mean1 * scale1
    sb1 = jnp.stack([scale1, bias1], axis=0).reshape(2, C, 1)

    x_spec = pl.BlockSpec((tb, C, L), lambda i: (i, 0, 0))
    h_spec = pl.BlockSpec((tb, Cout, L), lambda i: (i, 0, 0))
    st_spec = pl.BlockSpec((1, 2 * Cout, 1), lambda i: (i, 0, 0))
    sb1_spec = pl.BlockSpec((2, C, 1), lambda i: (0, 0, 0))
    sb2_spec = pl.BlockSpec((2, Cout, 1), lambda i: (0, 0, 0))
    w1_spec = pl.BlockSpec((Cout, K * C), lambda i: (0, 0))
    w2_spec = pl.BlockSpec((Cout, K * Cout), lambda i: (0, 0))
    params = pltpu.CompilerParams(dimension_semantics=("parallel",))

    # --- stage 1: h = conv1(relu(bn1(x))) (bf16) + per-block bn2 partials ----
    h, stats = pl.pallas_call(
        _stage1_kernel,
        out_shape=(jax.ShapeDtypeStruct((N, Cout, L), jnp.bfloat16),
                   jax.ShapeDtypeStruct((nb, 2 * Cout, 1), jnp.float32)),
        grid=(nb,),
        in_specs=[x_spec, sb1_spec, w1_spec],
        out_specs=(h_spec, st_spec),
        compiler_params=params,
    )(x, sb1, w1m)

    # Combine per-block (mean, centered SS) with Chan's formula (tiny, O(nb*C)).
    cnt = tb * L
    m_b = stats[:, :Cout, 0]                           # (nb, Cout)
    ss_b = stats[:, Cout:, 0]                          # (nb, Cout)
    mean2 = jnp.mean(m_b, axis=0)
    var2 = (jnp.sum(ss_b, axis=0)
            + cnt * jnp.sum((m_b - mean2[None, :]) ** 2, axis=0)) / (nb * cnt)
    scale2 = gamma2.astype(jnp.float32) * jax.lax.rsqrt(var2 + EPS)
    bias2 = beta2.astype(jnp.float32) - mean2 * scale2
    sb2 = jnp.stack([scale2, bias2], axis=0).reshape(2, Cout, 1)

    # --- stage 2: out = conv2(relu(bn2(h))) + x -------------------------------
    out = pl.pallas_call(
        _stage2_kernel,
        out_shape=jax.ShapeDtypeStruct((N, Cout, L), x.dtype),
        grid=(nb,),
        in_specs=[h_spec, x_spec, sb2_spec, w2_spec],
        out_specs=pl.BlockSpec((tb, Cout, L), lambda i: (i, 0, 0)),
        compiler_params=params,
    )(h, x, sb2, w2m)
    return out


@functools.partial(jax.jit, static_argnames=("force_tiled",))
def resblock_forward(x, gamma1, beta1, gamma2, beta2, w1, w2, force_tiled=False):
    """x: (N, C, L) PyTorch NCL layout; w1, w2: (Cout, Cin, K) PyTorch Conv1d."""
    N, C, L = x.shape
    Cout = w1.shape[0]
    assert Cout == C, "residual add requires in_channels == out_channels"

    w1m = _im2col_weight(w1)                 # (Cout, K*C)
    w2m = _im2col_weight(w2)                 # (Cout, K*Cout)

    fits = _fused_vmem_estimate(N, C, Cout, L, x.dtype.itemsize) <= _FUSED_VMEM_BUDGET
    if force_tiled or not fits:
        return _resblock_tiled(x, gamma1, beta1, gamma2, beta2, w1m, w2m)

    # Fully fused single pallas_call: one HBM read of x, one write of out,
    # no intermediate h in HBM, no wrapper-side reductions.
    # TODO(synk): on v7x (2 TensorCores) this single-step call uses one core;
    # a core-parallel batch split with a CMEM stats exchange would recover ~2x.
    gb1 = jnp.stack([gamma1, beta1], axis=0).astype(jnp.float32).reshape(2, C, 1)
    gb2 = jnp.stack([gamma2, beta2], axis=0).astype(jnp.float32).reshape(2, Cout, 1)
    return pl.pallas_call(
        _fused_kernel,
        out_shape=jax.ShapeDtypeStruct((N, Cout, L), x.dtype),
    )(x, gb1, gb2, w1m, w2m)


# ---------------- pure-JAX reference (for correctness check) ----------------
def resblock_ref(x, gamma1, beta1, gamma2, beta2, w1, w2):
    def bn_relu(v, g, b):
        mean = jnp.mean(v, axis=(0, 2), keepdims=True)
        var = jnp.mean((v - mean) ** 2, axis=(0, 2), keepdims=True)
        y = (v - mean) / jnp.sqrt(var + EPS) * g.reshape(1, -1, 1) + b.reshape(1, -1, 1)
        return jnp.maximum(y, 0.0)

    def circ_conv(v, w):
        vp = jnp.concatenate([v[:, :, -PAD:], v, v[:, :, :PAD]], axis=2)
        return jax.lax.conv_general_dilated(
            vp, w, window_strides=(1,), padding="VALID",
            dimension_numbers=("NCH", "OIH", "NCH"))

    h = circ_conv(bn_relu(x, gamma1, beta1), w1)
    h = circ_conv(bn_relu(h, gamma2, beta2), w2)
    return h + x


if __name__ == "__main__":
    key = jax.random.PRNGKey(0)
    N, C, L = 4, 8, 128          # batch, channels (in == out for the residual), length
    Cout = C
    ks = jax.random.split(key, 7)

    x = jax.random.normal(ks[0], (N, C, L), jnp.float32)
    gamma1 = 1.0 + 0.1 * jax.random.normal(ks[1], (C,), jnp.float32)
    beta1 = 0.1 * jax.random.normal(ks[2], (C,), jnp.float32)
    gamma2 = 1.0 + 0.1 * jax.random.normal(ks[3], (Cout,), jnp.float32)
    beta2 = 0.1 * jax.random.normal(ks[4], (Cout,), jnp.float32)
    w1 = 0.1 * jax.random.normal(ks[5], (Cout, C, K), jnp.float32)
    w2 = 0.1 * jax.random.normal(ks[6], (Cout, Cout, K), jnp.float32)

    ref = resblock_ref(x, gamma1, beta1, gamma2, beta2, w1, w2)

    # Fused single-call path (auto-selected at this size).
    out_fused = jax.block_until_ready(
        resblock_forward(x, gamma1, beta1, gamma2, beta2, w1, w2))
    assert out_fused.shape == x.shape and out_fused.dtype == x.dtype
    err_f = float(jnp.max(jnp.abs(out_fused - ref)))
    # bf16 MXU operands (f32 accumulation) vs an all-f32 reference: ~1e-3-level
    # error expected; layout / shift / BN bugs would be O(0.1-1).
    assert err_f < 2e-2, ("fused", err_f)

    # Batch-tiled two-call path (bf16 intermediate h, partial bn2 stats).
    out_tiled = jax.block_until_ready(
        resblock_forward(x, gamma1, beta1, gamma2, beta2, w1, w2,
                         force_tiled=True))
    err_t = float(jnp.max(jnp.abs(out_tiled - ref)))
    assert err_t < 4e-2, ("tiled", err_t)   # bf16 h adds ~1e-2 worst-case

    print("KERNEL_OK")
</pallas_src>

<mosaic_0001>
module attributes {stable_mosaic.version = 11 : i64} {
  func.func @_fused_kernel(%arg0: memref<4x8x128xf32, #tpu.memory_space<vmem>>, %arg1: memref<2x8x1xf32, #tpu.memory_space<vmem>>, %arg2: memref<2x8x1xf32, #tpu.memory_space<vmem>>, %arg3: memref<8x40xbf16, #tpu.memory_space<vmem>>, %arg4: memref<8x40xbf16, #tpu.memory_space<vmem>>, %arg5: memref<4x8x128xf32, #tpu.memory_space<vmem>>) attributes {dimension_semantics = [], scalar_prefetch = 0 : i64, scratch_operands = 0 : i64, tpu.core_type = #tpu.core_type<tc>} {
    %c0 = arith.constant 0 : index
    %c0_0 = arith.constant 0 : index
    %c0_1 = arith.constant 0 : index
    %0 = vector.load %arg0[%c0, %c0_0, %c0_1] : memref<4x8x128xf32, #tpu.memory_space<vmem>>, vector<4x8x128xf32>
    %c0_2 = arith.constant 0 : index
    %c0_3 = arith.constant 0 : index
    %c0_4 = arith.constant 0 : index
    %1 = vector.load %arg1[%c0_2, %c0_3, %c0_4] : memref<2x8x1xf32, #tpu.memory_space<vmem>>, vector<2x8x1xf32>
    %c0_5 = arith.constant 0 : index
    %c0_6 = arith.constant 0 : index
    %c0_7 = arith.constant 0 : index
    %2 = vector.load %arg2[%c0_5, %c0_6, %c0_7] : memref<2x8x1xf32, #tpu.memory_space<vmem>>, vector<2x8x1xf32>
    %cst = arith.constant dense<0.000000e+00> : vector<8x128xf32>
    %3 = vector.multi_reduction <add>, %0, %cst [0] : vector<4x8x128xf32> to vector<8x128xf32>
    %cst_8 = arith.constant dense<0.000000e+00> : vector<8xf32>
    %4 = vector.multi_reduction <add>, %3, %cst_8 [1] : vector<8x128xf32> to vector<8xf32>
    %5 = vector.shape_cast %4 : vector<8xf32> to vector<8x1xf32>
    %cst_9 = arith.constant 5.120000e+02 : f32
    %6 = vector.broadcast %cst_9 : f32 to vector<8x1xf32>
    %7 = arith.divf %5, %6 : vector<8x1xf32>
    %8 = vector.shape_cast %7 : vector<8x1xf32> to vector<1x8x1xf32>
    %9 = vector.broadcast %8 : vector<1x8x1xf32> to vector<4x8x128xf32>
    %10 = arith.subf %0, %9 : vector<4x8x128xf32>
    %11 = arith.mulf %10, %10 : vector<4x8x128xf32>
    %cst_10 = arith.constant dense<0.000000e+00> : vector<8x128xf32>
    %12 = vector.multi_reduction <add>, %11, %cst_10 [0] : vector<4x8x128xf32> to vector<8x128xf32>
    %cst_11 = arith.constant dense<0.000000e+00> : vector<8xf32>
    %13 = vector.multi_reduction <add>, %12, %cst_11 [1] : vector<8x128xf32> to vector<8xf32>
    %14 = vector.shape_cast %13 : vector<8xf32> to vector<8x1xf32>
    %15 = vector.extract_strided_slice %1 {offsets = [0, 0, 0], sizes = [1, 8, 1], strides = [1, 1, 1]} : vector<2x8x1xf32> to vector<1x8x1xf32>
    %16 = vector.shape_cast %15 : vector<1x8x1xf32> to vector<8x1xf32>
    %cst_12 = arith.constant 5.120000e+02 : f32
    %17 = vector.broadcast %cst_12 : f32 to vector<8x1xf32>
    %18 = arith.divf %14, %17 : vector<8x1xf32>
    %cst_13 = arith.constant 9.99999974E-6 : f32
    %19 = vector.broadcast %cst_13 : f32 to vector<8x1xf32>
    %20 = arith.addf %18, %19 : vector<8x1xf32>
    %21 = math.rsqrt %20 : vector<8x1xf32>
    %22 = arith.mulf %16, %21 : vector<8x1xf32>
    %23 = vector.extract_strided_slice %1 {offsets = [1, 0, 0], sizes = [1, 8, 1], strides = [1, 1, 1]} : vector<2x8x1xf32> to vector<1x8x1xf32>
    %24 = vector.shape_cast %23 : vector<1x8x1xf32> to vector<8x1xf32>
    %25 = arith.mulf %7, %22 : vector<8x1xf32>
    %26 = arith.subf %24, %25 : vector<8x1xf32>
    %c0_14 = arith.constant 0 : index
    %c0_15 = arith.constant 0 : index
    %27 = vector.load %arg3[%c0_14, %c0_15] : memref<8x40xbf16, #tpu.memory_space<vmem>>, vector<8x40xbf16>
    %28 = vector.shape_cast %22 : vector<8x1xf32> to vector<1x8x1xf32>
    %29 = vector.broadcast %28 : vector<1x8x1xf32> to vector<4x8x128xf32>
    %30 = arith.mulf %0, %29 : vector<4x8x128xf32>
    %31 = vector.shape_cast %26 : vector<8x1xf32> to vector<1x8x1xf32>
    %32 = vector.broadcast %31 : vector<1x8x1xf32> to vector<4x8x128xf32>
    %33 = arith.addf %30, %32 : vector<4x8x128xf32>
    %cst_16 = arith.constant 0.000000e+00 : f32
    %34 = vector.broadcast %cst_16 : f32 to vector<4x8x128xf32>
    %35 = arith.maximumf %33, %34 : vector<4x8x128xf32>
    %c2_i32 = arith.constant 2 : i32
    %36 = tpu.dynamic_rotate %35 by %c2_i32 dim 2 : vector<4x8x128xf32>, i32 -> vector<4x8x128xf32>
    %c1_i32 = arith.constant 1 : i32
    %37 = tpu.dynamic_rotate %35 by %c1_i32 dim 2 : vector<4x8x128xf32>, i32 -> vector<4x8x128xf32>
    %c127_i32 = arith.constant 127 : i32
    %38 = tpu.dynamic_rotate %35 by %c127_i32 dim 2 : vector<4x8x128xf32>, i32 -> vector<4x8x128xf32>
    %c126_i32 = arith.constant 126 : i32
    %39 = tpu.dynamic_rotate %35 by %c126_i32 dim 2 : vector<4x8x128xf32>, i32 -> vector<4x8x128xf32>
    %40 = tpu.concatenate %36, %37, %35, %38, %39 in 1 : vector<4x8x128xf32>, vector<4x8x128xf32>, vector<4x8x128xf32>, vector<4x8x128xf32>, vector<4x8x128xf32> -> vector<4x40x128xf32>
    %41 = arith.truncf %40 : vector<4x40x128xf32> to vector<4x40x128xbf16>
    %42 = vector.shape_cast %27 : vector<8x40xbf16> to vector<1x8x40xbf16>
    %43 = vector.broadcast %42 : vector<1x8x40xbf16> to vector<4x8x40xbf16>
    "tpu.trace_start"() <{level = 10 : i32, message = "bof,bfl->bol"}> : () -> ()
    %cst_17 = arith.constant dense<0.000000e+00> : vector<4x8x128xf32>
    %44 = tpu.matmul %43, %41, %cst_17 {dimension_numbers = #tpu.dot_dimension_numbers<[2], [1], [1], [2], [0, 0, 0, 1, 1, 2], [0], [0]>} : vector<4x8x40xbf16>, vector<4x40x128xbf16>, vector<4x8x128xf32> -> vector<4x8x128xf32>
    "tpu.trace_stop"() : () -> ()
    %cst_18 = arith.constant dense<0.000000e+00> : vector<8x128xf32>
    %45 = vector.multi_reduction <add>, %44, %cst_18 [0] : vector<4x8x128xf32> to vector<8x128xf32>
    %cst_19 = arith.constant dense<0.000000e+00> : vector<8xf32>
    %46 = vector.multi_reduction <add>, %45, %cst_19 [1] : vector<8x128xf32> to vector<8xf32>
    %47 = vector.shape_cast %46 : vector<8xf32> to vector<8x1xf32>
    %cst_20 = arith.constant 5.120000e+02 : f32
    %48 = vector.broadcast %cst_20 : f32 to vector<8x1xf32>
    %49 = arith.divf %47, %48 : vector<8x1xf32>
    %50 = vector.shape_cast %49 : vector<8x1xf32> to vector<1x8x1xf32>
    %51 = vector.broadcast %50 : vector<1x8x1xf32> to vector<4x8x128xf32>
    %52 = arith.subf %44, %51 : vector<4x8x128xf32>
    %53 = arith.mulf %52, %52 : vector<4x8x128xf32>
    %cst_21 = arith.constant dense<0.000000e+00> : vector<8x128xf32>
    %54 = vector.multi_reduction <add>, %53, %cst_21 [0] : vector<4x8x128xf32> to vector<8x128xf32>
    %cst_22 = arith.constant dense<0.000000e+00> : vector<8xf32>
    %55 = vector.multi_reduction <add>, %54, %cst_22 [1] : vector<8x128xf32> to vector<8xf32>
    %56 = vector.shape_cast %55 : vector<8xf32> to vector<8x1xf32>
    %57 = vector.extract_strided_slice %2 {offsets = [0, 0, 0], sizes = [1, 8, 1], strides = [1, 1, 1]} : vector<2x8x1xf32> to vector<1x8x1xf32>
    %58 = vector.shape_cast %57 : vector<1x8x1xf32> to vector<8x1xf32>
    %cst_23 = arith.constant 5.120000e+02 : f32
    %59 = vector.broadcast %cst_23 : f32 to vector<8x1xf32>
    %60 = arith.divf %56, %59 : vector<8x1xf32>
    %cst_24 = arith.constant 9.99999974E-6 : f32
    %61 = vector.broadcast %cst_24 : f32 to vector<8x1xf32>
    %62 = arith.addf %60, %61 : vector<8x1xf32>
    %63 = math.rsqrt %62 : vector<8x1xf32>
    %64 = arith.mulf %58, %63 : vector<8x1xf32>
    %65 = vector.extract_strided_slice %2 {offsets = [1, 0, 0], sizes = [1, 8, 1], strides = [1, 1, 1]} : vector<2x8x1xf32> to vector<1x8x1xf32>
    %66 = vector.shape_cast %65 : vector<1x8x1xf32> to vector<8x1xf32>
    %67 = arith.mulf %49, %64 : vector<8x1xf32>
    %68 = arith.subf %66, %67 : vector<8x1xf32>
    %c0_25 = arith.constant 0 : index
    %c0_26 = arith.constant 0 : index
    %69 = vector.load %arg4[%c0_25, %c0_26] : memref<8x40xbf16, #tpu.memory_space<vmem>>, vector<8x40xbf16>
    %70 = vector.shape_cast %64 : vector<8x1xf32> to vector<1x8x1xf32>
    %71 = vector.broadcast %70 : vector<1x8x1xf32> to vector<4x8x128xf32>
    %72 = arith.mulf %44, %71 : vector<4x8x128xf32>
    %73 = vector.shape_cast %68 : vector<8x1xf32> to vector<1x8x1xf32>
    %74 = vector.broadcast %73 : vector<1x8x1xf32> to vector<4x8x128xf32>
    %75 = arith.addf %72, %74 : vector<4x8x128xf32>
    %cst_27 = arith.constant 0.000000e+00 : f32
    %76 = vector.broadcast %cst_27 : f32 to vector<4x8x128xf32>
    %77 = arith.maximumf %75, %76 : vector<4x8x128xf32>
    %c2_i32_28 = arith.constant 2 : i32
    %78 = tpu.dynamic_rotate %77 by %c2_i32_28 dim 2 : vector<4x8x128xf32>, i32 -> vector<4x8x128xf32>
    %c1_i32_29 = arith.constant 1 : i32
    %79 = tpu.dynamic_rotate %77 by %c1_i32_29 dim 2 : vector<4x8x128xf32>, i32 -> vector<4x8x128xf32>
    %c127_i32_30 = arith.constant 127 : i32
    %80 = tpu.dynamic_rotate %77 by %c127_i32_30 dim 2 : vector<4x8x128xf32>, i32 -> vector<4x8x128xf32>
    %c126_i32_31 = arith.constant 126 : i32
    %81 = tpu.dynamic_rotate %77 by %c126_i32_31 dim 2 : vector<4x8x128xf32>, i32 -> vector<4x8x128xf32>
    %82 = tpu.concatenate %78, %79, %77, %80, %81 in 1 : vector<4x8x128xf32>, vector<4x8x128xf32>, vector<4x8x128xf32>, vector<4x8x128xf32>, vector<4x8x128xf32> -> vector<4x40x128xf32>
    %83 = arith.truncf %82 : vector<4x40x128xf32> to vector<4x40x128xbf16>
    %84 = vector.shape_cast %69 : vector<8x40xbf16> to vector<1x8x40xbf16>
    %85 = vector.broadcast %84 : vector<1x8x40xbf16> to vector<4x8x40xbf16>
    "tpu.trace_start"() <{level = 10 : i32, message = "bof,bfl->bol"}> : () -> ()
    %cst_32 = arith.constant dense<0.000000e+00> : vector<4x8x128xf32>
    %86 = tpu.matmul %85, %83, %cst_32 {dimension_numbers = #tpu.dot_dimension_numbers<[2], [1], [1], [2], [0, 0, 0, 1, 1, 2], [0], [0]>} : vector<4x8x40xbf16>, vector<4x40x128xbf16>, vector<4x8x128xf32> -> vector<4x8x128xf32>
    "tpu.trace_stop"() : () -> ()
    %87 = arith.addf %86, %0 : vector<4x8x128xf32>
    %c0_33 = arith.constant 0 : index
    %c0_34 = arith.constant 0 : index
    %c0_35 = arith.constant 0 : index
    %88 = vector.load %arg5[%c0_33, %c0_34, %c0_35] : memref<4x8x128xf32, #tpu.memory_space<vmem>>, vector<4x8x128xf32>
    tpu.vector_store %arg5[%c0_33, %c0_34, %c0_35], %87 {strides = array<i32>} : memref<4x8x128xf32, #tpu.memory_space<vmem>>, vector<4x8x128xf32>,
    return
  }
}

</mosaic_0001>

<llo_original>
// kernel: resblock_forward.1
$region0: #{resblock_forward.1}
  #allocation0 [shape = 'u32[]', space=smem, size = 0x4, offset = 0x4, fixed_abs, tag = 'smem constant byte address 0x4 - core index']
  #allocation1 [shape = 'u32[144,128]{1,0:T(1,128)}', space=vmem, size = 0x12000, scoped, tag = 'internal scratch']
  %s0 = inlined_call_operand.vmem [shape: f32[4,8,128], index: 0, kind: input, shape index: {}]
  %s1 = inlined_call_operand.vmem [shape: f32[2,8,1], index: 1, kind: input, shape index: {}]
  %s2 = inlined_call_operand.vmem [shape: f32[2,8,1], index: 2, kind: input, shape index: {}]
  %s3 = inlined_call_operand.vmem [shape: bf16[8,40], index: 3, kind: input, shape index: {}]
  %s4 = inlined_call_operand.vmem [shape: bf16[8,40], index: 4, kind: input, shape index: {}]
  %s5 = inlined_call_operand.hbm [shape: f32[4,8,128], index: 5, kind: output, shape index: {}]
  %s6 = sld [smem:[#allocation0]]
  $region30: #{resblock_forward.1} parent=0
    _
  %s8 = ssub.s32 1, %s6
  %s9 = scalar_select 0, %s8, %s6
  $region1: #{resblock_forward.1} parent=0
    #allocation2 [shape = 'u8[16384]{0}', space=vmem, size = 0x4000, scoped, tag = 'output window, operand 0, single buffered']
    #allocation3 [shape = 's32[1]{0}', space=sflag, size = 0x4, scoped, tag = 'scoped memory for resblock_forward.1']
    %10 = vsyncpa [#allocation3], 0
    // Predicated region
    $region2: #{resblock_forward.1} parent=1 // pred_check
      _
    $region3: #{resblock_forward.1} parent=1 // pred_check_branch
      %12 = sbr.rel (0) target = $region5
    $region4: #{resblock_forward.1} parent=1 // pred_region
      _
    $region5: #{resblock_forward.1} parent=1 // pred_fallthru
      _
    // Predicated region
    $region6: #{resblock_forward.1} parent=1 // pred_check
      _
    $region7: #{resblock_forward.1} parent=1 // pred_check_branch
      %14 = sbr.rel (0) target = $region9
    $region8: #{resblock_forward.1} parent=1 // pred_region
      _
    $region9: #{resblock_forward.1} parent=1 // pred_fallthru
      _
    // Predicated region
    $region10: #{resblock_forward.1} parent=1 // pred_check
      _
    $region11: #{resblock_forward.1} parent=1 // pred_check_branch
      %16 = sbr.rel (0) target = $region13
    $region12: #{resblock_forward.1} parent=1 // pred_region
      _
    $region13: #{resblock_forward.1} parent=1 // pred_fallthru
      _
    // Predicated region
    $region14: #{resblock_forward.1} parent=1 // pred_check
      _
    $region15: #{resblock_forward.1} parent=1 // pred_check_branch
      %18 = sbr.rel (0) target = $region17
    $region16: #{resblock_forward.1} parent=1 // pred_region
      _
    $region17: #{resblock_forward.1} parent=1 // pred_fallthru
      _
    // Predicated region
    $region18: #{resblock_forward.1} parent=1 // pred_check
      _
    $region19: #{resblock_forward.1} parent=1 // pred_check_branch
      %20 = sbr.rel (0) target = $region21
    $region20: #{resblock_forward.1} parent=1 // pred_region
      _
    $region21: #{resblock_forward.1} parent=1 // pred_fallthru
      _
    %v22 = vld [vmem:[%s0] sm:$0xff]
    %v23 = vld [vmem:[%s0 + $0x8] sm:$0xff]
    %v24 = vld [vmem:[%s0 + $0x10] sm:$0xff]
    %v25 = vld [vmem:[%s0 + $0x18] sm:$0xff]
    %v26 = vld [vmem:[%s1] sm:$0xff]
    %v27 = vld [vmem:[%s1 + $0x8] sm:$0xff]
    %v28 = vld [vmem:[%s2] sm:$0xff]
    %v29 = vld [vmem:[%s2 + $0x8] sm:$0xff]
    %v30 = vadd.f32 %v22, %v23
    %v31 = vadd.f32 %v30, %v24
    %v32 = vadd.f32 %v31, %v25
    %33 = vadd.xlane.f32.xlu0 %v32
    %v34 = vpop.xlane.xlu0 %33
    %v35 = vrcp.pop 512.0
    %v36 = vmul.f32 %v34, %v35
    %v37 = vsub.f32 %v22, %v36
    %v38 = vsub.f32 %v23, %v36
    %v39 = vsub.f32 %v24, %v36
    %v40 = vsub.f32 %v25, %v36
    %v41 = vmul.f32 %v37, %v37
    %v42 = vmul.f32 %v38, %v38
    %v43 = vmul.f32 %v39, %v39
    %v44 = vmul.f32 %v40, %v40
    %v45 = vadd.f32 %v41, %v42
    %v46 = vadd.f32 %v45, %v43
    %v47 = vadd.f32 %v46, %v44
    %48 = vadd.xlane.f32.xlu0 %v47
    %v49 = vpop.xlane.xlu0 %48
    %v50 = vmul.f32 %v49, %v35
    %v51 = vadd.f32 %v50, 1e-05
    %v52 = vrsqrt.pop %v51
    %v53 = vmul.f32 %v26, %v52
    %v54 = vmul.f32 %v36, %v53
    %v55 = vsub.f32 %v27, %v54
    %v56 = vld [vmem:[%s3] sm:$0xf]
    %58 = vset.pattern.permute.xlu0 0
    %59 = vperm.xlu0 %58, %v53
    %v60 = vpop.permute.xlu0 %59
    %v62 = vmul.f32 %v22, %v60
    %v63 = vmul.f32 %v23, %v60
    %v64 = vmul.f32 %v24, %v60
    %v65 = vmul.f32 %v25, %v60
    %67 = vset.pattern.permute.xlu0 0
    %68 = vperm.xlu0 %67, %v55
    %v69 = vpop.permute.xlu0 %68
    %v71 = vadd.f32 %v62, %v69
    %v72 = vadd.f32 %v63, %v69
    %v73 = vadd.f32 %v64, %v69
    %v74 = vadd.f32 %v65, %v69
    %v75 = vmax.f32 %v71, 0.0
    %v76 = vmax.f32 %v72, 0.0
    %v77 = vmax.f32 %v73, 0.0
    %v78 = vmax.f32 %v74, 0.0
    %79 = vrot.lane.b32.xlu0 %v75, 2
    %v80 = vpop.permute.xlu0 %79
    %81 = vrot.lane.b32.xlu0 %v76, 2
    %v82 = vpop.permute.xlu0 %81
    %83 = vrot.lane.b32.xlu0 %v77, 2
    %v84 = vpop.permute.xlu0 %83
    %85 = vrot.lane.b32.xlu0 %v78, 2
    %v86 = vpop.permute.xlu0 %85
    %87 = vrot.lane.b32.xlu0 %v75, 1
    %v88 = vpop.permute.xlu0 %87
    %89 = vrot.lane.b32.xlu0 %v76, 1
    %v90 = vpop.permute.xlu0 %89
    %91 = vrot.lane.b32.xlu0 %v77, 1
    %v92 = vpop.permute.xlu0 %91
    %93 = vrot.lane.b32.xlu0 %v78, 1
    %v94 = vpop.permute.xlu0 %93
    %95 = vrot.lane.b32.xlu0 %v75, 127
    %v96 = vpop.permute.xlu0 %95
    %97 = vrot.lane.b32.xlu0 %v76, 127
    %v98 = vpop.permute.xlu0 %97
    %99 = vrot.lane.b32.xlu0 %v77, 127
    %v100 = vpop.permute.xlu0 %99
    %101 = vrot.lane.b32.xlu0 %v78, 127
    %v102 = vpop.permute.xlu0 %101
    %103 = vrot.lane.b32.xlu0 %v75, 126
    %v104 = vpop.permute.xlu0 %103
    %105 = vrot.lane.b32.xlu0 %v76, 126
    %v106 = vpop.permute.xlu0 %105
    %107 = vrot.lane.b32.xlu0 %v77, 126
    %v108 = vpop.permute.xlu0 %107
    %109 = vrot.lane.b32.xlu0 %v78, 126
    %v110 = vpop.permute.xlu0 %109
    %v111 = vpack.c.bf16 %v88, %v80
    %v112 = vpack.c.bf16 %v96, %v75
    %v113 = vpack.c.bf16 %v104, %v104
    %v114 = vpack.c.bf16 %v90, %v82
    %v115 = vpack.c.bf16 %v98, %v76
    %v116 = vpack.c.bf16 %v106, %v106
    %v117 = vpack.c.bf16 %v92, %v84
    %v118 = vpack.c.bf16 %v100, %v77
    %v119 = vpack.c.bf16 %v108, %v108
    %v120 = vpack.c.bf16 %v94, %v86
    %v121 = vpack.c.bf16 %v102, %v78
    %v122 = vpack.c.bf16 %v110, %v110
    %vm123 = vcmask 326656
    %v125 = vsel %vm123, %v56, 0
    %vm127 = vcmask 1043456
    %v129 = vsel %vm127, %v113, 0
    %131 = vmatprep.subr.bf16.mxu0 0
    %132 = vmatpush1.bf16.msra.mxu0 %v111
    %133 = vmatprep.subr.bf16.mxu0 0
    %134 = vmatpush1.bf16.msra.mxu0 %v112
    %135 = vmatprep.subr.bf16.mxu0 0
    %136 = vmatpush1.bf16.msra.mxu0 %v129
    %137 = vmatprep.subr.bf16.mxu0 0
    %138 = vmatpush1.bf16.msra.mxu0 0
    %139 = vmatprep.subr.bf16.mxu0 0
    %140 = vmatpush1.bf16.msra.mxu0 0
    %141 = vmatprep.subr.bf16.mxu0 0
    %142 = vmatpush1.bf16.msra.mxu0 0
    %143 = vmatprep.subr.bf16.mxu0 0
    %144 = vmatpush1.bf16.msra.mxu0 0
    %145 = vmatprep.subr.bf16.mxu0 0
    %146 = vmatpush1.bf16.msra.mxu0 0
    %147 = vmatprep.subr.bf16.mxu0 0
    %148 = vmatpush1.bf16.msra.mxu0 0
    %149 = vmatprep.subr.bf16.mxu0 0
    %150 = vmatpush1.bf16.msra.mxu0 0
    %151 = vmatprep.subr.bf16.mxu0 0
    %152 = vmatpush1.bf16.msra.mxu0 0
    %153 = vmatprep.subr.bf16.mxu0 0
    %154 = vmatpush1.bf16.msra.mxu0 0
    %155 = vmatprep.subr.bf16.mxu0 0
    %156 = vmatpush1.bf16.msra.mxu0 0
    %157 = vmatprep.subr.bf16.mxu0 0
    %158 = vmatpush1.bf16.msra.mxu0 0
    %159 = vmatprep.subr.bf16.mxu0 0
    %160 = vmatpush1.bf16.msra.mxu0 0
    %161 = vmatprep.subr.bf16.mxu0 0
    %162 = vmatpush1.bf16.msra.mxu0 0
    %163 = vmatprep.mubr.bf16.mxu0 0
    %164 = vmatmul.mubr.bf16.gmra.mrb[0].mxu0 %v125
    %v165 = vpop.f32.mrb[0].mxu0
    %v166 = vadd.f32 0.0, %v165
    %v167 = vpop.f32.mrb[0].mxu0
    %v168 = vpop.f32.mrb[0].mxu0
    %v169 = vpop.f32.mrb[0].mxu0
    %170 = vdwg.mxu0
    %v172 = vsel %vm127, %v116, 0
    %174 = vmatprep.subr.bf16.mxu0 0
    %175 = vmatpush1.bf16.msra.mxu0 %v114
    %176 = vmatprep.subr.bf16.mxu0 0
    %177 = vmatpush1.bf16.msra.mxu0 %v115
    %178 = vmatprep.subr.bf16.mxu0 0
    %179 = vmatpush1.bf16.msra.mxu0 %v172
    %180 = vmatprep.subr.bf16.mxu0 0
    %181 = vmatpush1.bf16.msra.mxu0 0
    %182 = vmatprep.subr.bf16.mxu0 0
    %183 = vmatpush1.bf16.msra.mxu0 0
    %184 = vmatprep.subr.bf16.mxu0 0
    %185 = vmatpush1.bf16.msra.mxu0 0
    %186 = vmatprep.subr.bf16.mxu0 0
    %187 = vmatpush1.bf16.msra.mxu0 0
    %188 = vmatprep.subr.bf16.mxu0 0
    %189 = vmatpush1.bf16.msra.mxu0 0
    %190 = vmatprep.subr.bf16.mxu0 0
    %191 = vmatpush1.bf16.msra.mxu0 0
    %192 = vmatprep.subr.bf16.mxu0 0
    %193 = vmatpush1.bf16.msra.mxu0 0
    %194 = vmatprep.subr.bf16.mxu0 0
    %195 = vmatpush1.bf16.msra.mxu0 0
    %196 = vmatprep.subr.bf16.mxu0 0
    %197 = vmatpush1.bf16.msra.mxu0 0
    %198 = vmatprep.subr.bf16.mxu0 0
    %199 = vmatpush1.bf16.msra.mxu0 0
    %200 = vmatprep.subr.bf16.mxu0 0
    %201 = vmatpush1.bf16.msra.mxu0 0
    %202 = vmatprep.subr.bf16.mxu0 0
    %203 = vmatpush1.bf16.msra.mxu0 0
    %204 = vmatprep.subr.bf16.mxu0 0
    %205 = vmatpush1.bf16.msra.mxu0 0
    %206 = vmatprep.mubr.bf16.mxu0 0
    %207 = vmatmul.mubr.bf16.gmra.mrb[0].mxu0 %v125
    %v208 = vpop.f32.mrb[0].mxu0
    %v209 = vadd.f32 0.0, %v208
    %v210 = vpop.f32.mrb[0].mxu0
    %v211 = vpop.f32.mrb[0].mxu0
    %v212 = vpop.f32.mrb[0].mxu0
    %213 = vdwg.mxu0
    %v215 = vsel %vm127, %v119, 0
    %217 = vmatprep.subr.bf16.mxu0 0
    %218 = vmatpush1.bf16.msra.mxu0 %v117
    %219 = vmatprep.subr.bf16.mxu0 0
    %220 = vmatpush1.bf16.msra.mxu0 %v118
    %221 = vmatprep.subr.bf16.mxu0 0
    %222 = vmatpush1.bf16.msra.mxu0 %v215
    %223 = vmatprep.subr.bf16.mxu0 0
    %224 = vmatpush1.bf16.msra.mxu0 0
    %225 = vmatprep.subr.bf16.mxu0 0
    %226 = vmatpush1.bf16.msra.mxu0 0
    %227 = vmatprep.subr.bf16.mxu0 0
    %228 = vmatpush1.bf16.msra.mxu0 0
    %229 = vmatprep.subr.bf16.mxu0 0
    %230 = vmatpush1.bf16.msra.mxu0 0
    %231 = vmatprep.subr.bf16.mxu0 0
    %232 = vmatpush1.bf16.msra.mxu0 0
    %233 = vmatprep.subr.bf16.mxu0 0
    %234 = vmatpush1.bf16.msra.mxu0 0
    %235 = vmatprep.subr.bf16.mxu0 0
    %236 = vmatpush1.bf16.msra.mxu0 0
    %237 = vmatprep.subr.bf16.mxu0 0
    %238 = vmatpush1.bf16.msra.mxu0 0
    %239 = vmatprep.subr.bf16.mxu0 0
    %240 = vmatpush1.bf16.msra.mxu0 0
    %241 = vmatprep.subr.bf16.mxu0 0
    %242 = vmatpush1.bf16.msra.mxu0 0
    %243 = vmatprep.subr.bf16.mxu0 0
    %244 = vmatpush1.bf16.msra.mxu0 0
    %245 = vmatprep.subr.bf16.mxu0 0
    %246 = vmatpush1.bf16.msra.mxu0 0
    %247 = vmatprep.subr.bf16.mxu0 0
    %248 = vmatpush1.bf16.msra.mxu0 0
    %249 = vmatprep.mubr.bf16.mxu0 0
    %250 = vmatmul.mubr.bf16.gmra.mrb[0].mxu0 %v125
    %v251 = vpop.f32.mrb[0].mxu0
    %v252 = vadd.f32 0.0, %v251
    %v253 = vpop.f32.mrb[0].mxu0
    %v254 = vpop.f32.mrb[0].mxu0
    %v255 = vpop.f32.mrb[0].mxu0
    %256 = vdwg.mxu0
    %v258 = vsel %vm127, %v122, 0
    %260 = vmatprep.subr.bf16.mxu0 0
    %261 = vmatpush1.bf16.msra.mxu0 %v120
    %262 = vmatprep.subr.bf16.mxu0 0
    %263 = vmatpush1.bf16.msra.mxu0 %v121
    %264 = vmatprep.subr.bf16.mxu0 0
    %265 = vmatpush1.bf16.msra.mxu0 %v258
    %266 = vmatprep.subr.bf16.mxu0 0
    %267 = vmatpush1.bf16.msra.mxu0 0
    %268 = vmatprep.subr.bf16.mxu0 0
    %269 = vmatpush1.bf16.msra.mxu0 0
    %270 = vmatprep.subr.bf16.mxu0 0
    %271 = vmatpush1.bf16.msra.mxu0 0
    %272 = vmatprep.subr.bf16.mxu0 0
    %273 = vmatpush1.bf16.msra.mxu0 0
    %274 = vmatprep.subr.bf16.mxu0 0
    %275 = vmatpush1.bf16.msra.mxu0 0
    %276 = vmatprep.subr.bf16.mxu0 0
    %277 = vmatpush1.bf16.msra.mxu0 0
    %278 = vmatprep.subr.bf16.mxu0 0
    %279 = vmatpush1.bf16.msra.mxu0 0
    %280 = vmatprep.subr.bf16.mxu0 0
    %281 = vmatpush1.bf16.msra.mxu0 0
    %282 = vmatprep.subr.bf16.mxu0 0
    %283 = vmatpush1.bf16.msra.mxu0 0
    %284 = vmatprep.subr.bf16.mxu0 0
    %285 = vmatpush1.bf16.msra.mxu0 0
    %286 = vmatprep.subr.bf16.mxu0 0
    %287 = vmatpush1.bf16.msra.mxu0 0
    %288 = vmatprep.subr.bf16.mxu0 0
    %289 = vmatpush1.bf16.msra.mxu0 0
    %290 = vmatprep.subr.bf16.mxu0 0
    %291 = vmatpush1.bf16.msra.mxu0 0
    %292 = vmatprep.mubr.bf16.mxu0 0
    %293 = vmatmul.mubr.bf16.gmra.mrb[0].mxu0 %v125
    %v294 = vpop.f32.mrb[0].mxu0
    %v295 = vadd.f32 0.0, %v294
    %v296 = vpop.f32.mrb[0].mxu0
    %v297 = vpop.f32.mrb[0].mxu0
    %v298 = vpop.f32.mrb[0].mxu0
    %299 = vdwg.mxu0
    %v300 = vadd.f32 %v166, %v209
    %v301 = vadd.f32 %v300, %v252
    %v302 = vadd.f32 %v301, %v295
    %303 = vadd.xlane.f32.xlu0 %v302
    %v304 = vpop.xlane.xlu0 %303
    %v305 = vmul.f32 %v304, %v35
    %v306 = vsub.f32 %v166, %v305
    %v307 = vsub.f32 %v209, %v305
    %v308 = vsub.f32 %v252, %v305
    %v309 = vsub.f32 %v295, %v305
    %v310 = vmul.f32 %v306, %v306
    %v311 = vmul.f32 %v307, %v307
    %v312 = vmul.f32 %v308, %v308
    %v313 = vmul.f32 %v309, %v309
    %v314 = vadd.f32 %v310, %v311
    %v315 = vadd.f32 %v314, %v312
    %v316 = vadd.f32 %v315, %v313
    %317 = vadd.xlane.f32.xlu0 %v316
    %v318 = vpop.xlane.xlu0 %317
    %v319 = vmul.f32 %v318, %v35
    %v320 = vadd.f32 %v319, 1e-05
    %v321 = vrsqrt.pop %v320
    %v322 = vmul.f32 %v28, %v321
    %v323 = vmul.f32 %v305, %v322
    %v324 = vsub.f32 %v29, %v323
    %v325 = vld [vmem:[%s4] sm:$0xf]
    %327 = vset.pattern.permute.xlu0 0
    %328 = vperm.xlu0 %327, %v322
    %v329 = vpop.permute.xlu0 %328
    %v331 = vmul.f32 %v166, %v329
    %v332 = vmul.f32 %v209, %v329
    %v333 = vmul.f32 %v252, %v329
    %v334 = vmul.f32 %v295, %v329
    %336 = vset.pattern.permute.xlu0 0
    %337 = vperm.xlu0 %336, %v324
    %v338 = vpop.permute.xlu0 %337
    %v340 = vadd.f32 %v331, %v338
    %v341 = vadd.f32 %v332, %v338
    %v342 = vadd.f32 %v333, %v338
    %v343 = vadd.f32 %v334, %v338
    %v344 = vmax.f32 %v340, 0.0
    %v345 = vmax.f32 %v341, 0.0
    %v346 = vmax.f32 %v342, 0.0
    %v347 = vmax.f32 %v343, 0.0
    %348 = vrot.lane.b32.xlu0 %v344, 2
    %v349 = vpop.permute.xlu0 %348
    %350 = vrot.lane.b32.xlu0 %v345, 2
    %v351 = vpop.permute.xlu0 %350
    %352 = vrot.lane.b32.xlu0 %v346, 2
    %v353 = vpop.permute.xlu0 %352
    %354 = vrot.lane.b32.xlu0 %v347, 2
    %v355 = vpop.permute.xlu0 %354
    %356 = vrot.lane.b32.xlu0 %v344, 1
    %v357 = vpop.permute.xlu0 %356
    %358 = vrot.lane.b32.xlu0 %v345, 1
    %v359 = vpop.permute.xlu0 %358
    %360 = vrot.lane.b32.xlu0 %v346, 1
    %v361 = vpop.permute.xlu0 %360
    %362 = vrot.lane.b32.xlu0 %v347, 1
    %v363 = vpop.permute.xlu0 %362
    %364 = vrot.lane.b32.xlu0 %v344, 127
    %v365 = vpop.permute.xlu0 %364
    %366 = vrot.lane.b32.xlu0 %v345, 127
    %v367 = vpop.permute.xlu0 %366
    %368 = vrot.lane.b32.xlu0 %v346, 127
    %v369 = vpop.permute.xlu0 %368
    %370 = vrot.lane.b32.xlu0 %v347, 127
    %v371 = vpop.permute.xlu0 %370
    %372 = vrot.lane.b32.xlu0 %v344, 126
    %v373 = vpop.permute.xlu0 %372
    %374 = vrot.lane.b32.xlu0 %v345, 126
    %v375 = vpop.permute.xlu0 %374
    %376 = vrot.lane.b32.xlu0 %v346, 126
    %v377 = vpop.permute.xlu0 %376
    %378 = vrot.lane.b32.xlu0 %v347, 126
    %v379 = vpop.permute.xlu0 %378
    %v380 = vpack.c.bf16 %v357, %v349
    %v381 = vpack.c.bf16 %v365, %v344
    %v382 = vpack.c.bf16 %v373, %v373
    %v383 = vpack.c.bf16 %v359, %v351
    %v384 = vpack.c.bf16 %v367, %v345
    %v385 = vpack.c.bf16 %v375, %v375
    %v386 = vpack.c.bf16 %v361, %v353
    %v387 = vpack.c.bf16 %v369, %v346
    %v388 = vpack.c.bf16 %v377, %v377
    %v389 = vpack.c.bf16 %v363, %v355
    %v390 = vpack.c.bf16 %v371, %v347
    %v391 = vpack.c.bf16 %v379, %v379
    %v393 = vsel %vm123, %v325, 0
    %v396 = vsel %vm127, %v382, 0
    %398 = vmatprep.subr.bf16.mxu0 0
    %399 = vmatpush1.bf16.msra.mxu0 %v380
    %400 = vmatprep.subr.bf16.mxu0 0
    %401 = vmatpush1.bf16.msra.mxu0 %v381
    %402 = vmatprep.subr.bf16.mxu0 0
    %403 = vmatpush1.bf16.msra.mxu0 %v396
    %404 = vmatprep.subr.bf16.mxu0 0
    %405 = vmatpush1.bf16.msra.mxu0 0
    %406 = vmatprep.subr.bf16.mxu0 0
    %407 = vmatpush1.bf16.msra.mxu0 0
    %408 = vmatprep.subr.bf16.mxu0 0
    %409 = vmatpush1.bf16.msra.mxu0 0
    %410 = vmatprep.subr.bf16.mxu0 0
    %411 = vmatpush1.bf16.msra.mxu0 0
    %412 = vmatprep.subr.bf16.mxu0 0
    %413 = vmatpush1.bf16.msra.mxu0 0
    %414 = vmatprep.subr.bf16.mxu0 0
    %415 = vmatpush1.bf16.msra.mxu0 0
    %416 = vmatprep.subr.bf16.mxu0 0
    %417 = vmatpush1.bf16.msra.mxu0 0
    %418 = vmatprep.subr.bf16.mxu0 0
    %419 = vmatpush1.bf16.msra.mxu0 0
    %420 = vmatprep.subr.bf16.mxu0 0
    %421 = vmatpush1.bf16.msra.mxu0 0
    %422 = vmatprep.subr.bf16.mxu0 0
    %423 = vmatpush1.bf16.msra.mxu0 0
    %424 = vmatprep.subr.bf16.mxu0 0
    %425 = vmatpush1.bf16.msra.mxu0 0
    %426 = vmatprep.subr.bf16.mxu0 0
    %427 = vmatpush1.bf16.msra.mxu0 0
    %428 = vmatprep.subr.bf16.mxu0 0
    %429 = vmatpush1.bf16.msra.mxu0 0
    %430 = vmatprep.mubr.bf16.mxu0 0
    %431 = vmatmul.mubr.bf16.gmra.mrb[0].mxu0 %v393
    %v432 = vpop.f32.mrb[0].mxu0
    %v433 = vadd.f32 %v22, %v432
    %v434 = vpop.f32.mrb[0].mxu0
    %v435 = vpop.f32.mrb[0].mxu0
    %v436 = vpop.f32.mrb[0].mxu0
    %437 = vdwg.mxu0
    %v439 = vsel %vm127, %v385, 0
    %441 = vmatprep.subr.bf16.mxu0 0
    %442 = vmatpush1.bf16.msra.mxu0 %v383
    %443 = vmatprep.subr.bf16.mxu0 0
    %444 = vmatpush1.bf16.msra.mxu0 %v384
    %445 = vmatprep.subr.bf16.mxu0 0
    %446 = vmatpush1.bf16.msra.mxu0 %v439
    %447 = vmatprep.subr.bf16.mxu0 0
    %448 = vmatpush1.bf16.msra.mxu0 0
    %449 = vmatprep.subr.bf16.mxu0 0
    %450 = vmatpush1.bf16.msra.mxu0 0
    %451 = vmatprep.subr.bf16.mxu0 0
    %452 = vmatpush1.bf16.msra.mxu0 0
    %453 = vmatprep.subr.bf16.mxu0 0
    %454 = vmatpush1.bf16.msra.mxu0 0
    %455 = vmatprep.subr.bf16.mxu0 0
    %456 = vmatpush1.bf16.msra.mxu0 0
    %457 = vmatprep.subr.bf16.mxu0 0
    %458 = vmatpush1.bf16.msra.mxu0 0
    %459 = vmatprep.subr.bf16.mxu0 0
    %460 = vmatpush1.bf16.msra.mxu0 0
    %461 = vmatprep.subr.bf16.mxu0 0
    %462 = vmatpush1.bf16.msra.mxu0 0
    %463 = vmatprep.subr.bf16.mxu0 0
    %464 = vmatpush1.bf16.msra.mxu0 0
    %465 = vmatprep.subr.bf16.mxu0 0
    %466 = vmatpush1.bf16.msra.mxu0 0
    %467 = vmatprep.subr.bf16.mxu0 0
    %468 = vmatpush1.bf16.msra.mxu0 0
    %469 = vmatprep.subr.bf16.mxu0 0
    %470 = vmatpush1.bf16.msra.mxu0 0
    %471 = vmatprep.subr.bf16.mxu0 0
    %472 = vmatpush1.bf16.msra.mxu0 0
    %473 = vmatprep.mubr.bf16.mxu0 0
    %474 = vmatmul.mubr.bf16.gmra.mrb[0].mxu0 %v393
    %v475 = vpop.f32.mrb[0].mxu0
    %v476 = vadd.f32 %v23, %v475
    %v477 = vpop.f32.mrb[0].mxu0
    %v478 = vpop.f32.mrb[0].mxu0
    %v479 = vpop.f32.mrb[0].mxu0
    %480 = vdwg.mxu0
    %v482 = vsel %vm127, %v388, 0
    %484 = vmatprep.subr.bf16.mxu0 0
    %485 = vmatpush1.bf16.msra.mxu0 %v386
    %486 = vmatprep.subr.bf16.mxu0 0
    %487 = vmatpush1.bf16.msra.mxu0 %v387
    %488 = vmatprep.subr.bf16.mxu0 0
    %489 = vmatpush1.bf16.msra.mxu0 %v482
    %490 = vmatprep.subr.bf16.mxu0 0
    %491 = vmatpush1.bf16.msra.mxu0 0
    %492 = vmatprep.subr.bf16.mxu0 0
    %493 = vmatpush1.bf16.msra.mxu0 0
    %494 = vmatprep.subr.bf16.mxu0 0
    %495 = vmatpush1.bf16.msra.mxu0 0
    %496 = vmatprep.subr.bf16.mxu0 0
    %497 = vmatpush1.bf16.msra.mxu0 0
    %498 = vmatprep.subr.bf16.mxu0 0
    %499 = vmatpush1.bf16.msra.mxu0 0
    %500 = vmatprep.subr.bf16.mxu0 0
    %501 = vmatpush1.bf16.msra.mxu0 0
    %502 = vmatprep.subr.bf16.mxu0 0
    %503 = vmatpush1.bf16.msra.mxu0 0
    %504 = vmatprep.subr.bf16.mxu0 0
    %505 = vmatpush1.bf16.msra.mxu0 0
    %506 = vmatprep.subr.bf16.mxu0 0
    %507 = vmatpush1.bf16.msra.mxu0 0
    %508 = vmatprep.subr.bf16.mxu0 0
    %509 = vmatpush1.bf16.msra.mxu0 0
    %510 = vmatprep.subr.bf16.mxu0 0
    %511 = vmatpush1.bf16.msra.mxu0 0
    %512 = vmatprep.subr.bf16.mxu0 0
    %513 = vmatpush1.bf16.msra.mxu0 0
    %514 = vmatprep.subr.bf16.mxu0 0
    %515 = vmatpush1.bf16.msra.mxu0 0
    %516 = vmatprep.mubr.bf16.mxu0 0
    %517 = vmatmul.mubr.bf16.gmra.mrb[0].mxu0 %v393
    %v518 = vpop.f32.mrb[0].mxu0
    %v519 = vadd.f32 %v24, %v518
    %v520 = vpop.f32.mrb[0].mxu0
    %v521 = vpop.f32.mrb[0].mxu0
    %v522 = vpop.f32.mrb[0].mxu0
    %523 = vdwg.mxu0
    %v525 = vsel %vm127, %v391, 0
    %527 = vmatprep.subr.bf16.mxu0 0
    %528 = vmatpush1.bf16.msra.mxu0 %v389
    %529 = vmatprep.subr.bf16.mxu0 0
    %530 = vmatpush1.bf16.msra.mxu0 %v390
    %531 = vmatprep.subr.bf16.mxu0 0
    %532 = vmatpush1.bf16.msra.mxu0 %v525
    %533 = vmatprep.subr.bf16.mxu0 0
    %534 = vmatpush1.bf16.msra.mxu0 0
    %535 = vmatprep.subr.bf16.mxu0 0
    %536 = vmatpush1.bf16.msra.mxu0 0
    %537 = vmatprep.subr.bf16.mxu0 0
    %538 = vmatpush1.bf16.msra.mxu0 0
    %539 = vmatprep.subr.bf16.mxu0 0
    %540 = vmatpush1.bf16.msra.mxu0 0
    %541 = vmatprep.subr.bf16.mxu0 0
    %542 = vmatpush1.bf16.msra.mxu0 0
    %543 = vmatprep.subr.bf16.mxu0 0
    %544 = vmatpush1.bf16.msra.mxu0 0
    %545 = vmatprep.subr.bf16.mxu0 0
    %546 = vmatpush1.bf16.msra.mxu0 0
    %547 = vmatprep.subr.bf16.mxu0 0
    %548 = vmatpush1.bf16.msra.mxu0 0
    %549 = vmatprep.subr.bf16.mxu0 0
    %550 = vmatpush1.bf16.msra.mxu0 0
    %551 = vmatprep.subr.bf16.mxu0 0
    %552 = vmatpush1.bf16.msra.mxu0 0
    %553 = vmatprep.subr.bf16.mxu0 0
    %554 = vmatpush1.bf16.msra.mxu0 0
    %555 = vmatprep.subr.bf16.mxu0 0
    %556 = vmatpush1.bf16.msra.mxu0 0
    %557 = vmatprep.subr.bf16.mxu0 0
    %558 = vmatpush1.bf16.msra.mxu0 0
    %559 = vmatprep.mubr.bf16.mxu0 0
    %560 = vmatmul.mubr.bf16.gmra.mrb[0].mxu0 %v393
    %v561 = vpop.f32.mrb[0].mxu0
    %v562 = vadd.f32 %v25, %v561
    %v563 = vpop.f32.mrb[0].mxu0
    %v564 = vpop.f32.mrb[0].mxu0
    %v565 = vpop.f32.mrb[0].mxu0
    %566 = vdwg.mxu0
    %567 = vst [vmem:[#allocation2] sm:$0xff] %v433
    %568 = vst [vmem:[#allocation2 + $0x8] sm:$0xff] %v476
    %569 = vst [vmem:[#allocation2 + $0x10] sm:$0xff] %v519
    %570 = vst [vmem:[#allocation2 + $0x18] sm:$0xff] %v562
    // Predicated region
    $region22: #{resblock_forward.1} parent=1 // pred_check
      _
    $region23: #{resblock_forward.1} parent=1 // pred_check_branch
      %572 = sbr.rel (0) target = $region25
    $region24: #{resblock_forward.1} parent=1 // pred_region
      %s574 = ssub.s32 512, 512
      %575 = vsyncadd [#allocation3], %s574
      %s576 = sshll.u32 [#allocation2], 4
      %s577 = int_to_ptr.vmem [resolvable:$true] %s576
      %582 = dma.vmem_to_hbm [thread:$0]  %s577, 512, %s5, [#allocation3], 128, 128, 8
    $region25: #{resblock_forward.1} parent=1 // pred_fallthru
      _
    // Predicated region
    $region26: #{resblock_forward.1} parent=1 // pred_check
      _
    $region27: #{resblock_forward.1} parent=1 // pred_check_branch
      %584 = sbr.rel (0) target = $region29
    $region28: #{resblock_forward.1} parent=1 // pred_region
      %585 = dma.done [#allocation3], 512
    $region29: #{resblock_forward.1} parent=1 // pred_fallthru
      _
    %586 = vsyncpa [#allocation3], 1

</llo_original>
